<compile_context>
chip_gen: v5e
topology: v5e:2x2
jax: 0.10.0
libtpu: 0.0.40
codegen_flags: <defaults>
</compile_context>

<pallas_src>
import jax
import jax.numpy as jnp
from jax.experimental import pallas as pl
from jax.experimental.pallas import tpu as pltpu

_LANE = 128


def _round_up(x, m):
    return ((x + m - 1) // m) * m


def policy_net_kernel(x_ref, w1_ref, b1_ref, w2_ref, b2_ref, o_ref):
    # ---- fc1 + ReLU (MXU matmul, f32 accumulation; bias/ReLU on the VPU in f32) ----
    x = x_ref[...].astype(w1_ref.dtype)                   # in-kernel cast (no extra HBM pass)
    h = jnp.dot(x, w1_ref[...],
                preferred_element_type=jnp.float32)       # [TB, Hp] f32
    h = jnp.maximum(h + b1_ref[...], 0.0)

    # ---- fc2 (cast back to the matmul dtype so bf16 weights stay on the MXU fast path)
    logits = jnp.dot(h.astype(w2_ref.dtype), w2_ref[...],
                     preferred_element_type=jnp.float32)  # [TB, Ap] f32
    logits = logits + b2_ref[...]                         # padded action cols get -1e30

    # ---- numerically stable softmax over the last axis, exact normalization ----
    m = jnp.max(logits, axis=-1, keepdims=True)
    e = jnp.exp(logits - m)                               # padded cols underflow to 0
    denom = jnp.sum(e, axis=-1, keepdims=True)
    o_ref[...] = (e / denom).astype(o_ref.dtype)          # exact reciprocal: rows sum to 1


def prepare_policy_net_params(w1, b1, w2, b2, *, matmul_dtype=jnp.bfloat16):
    """One-time padding/casting of parameters (hoisted out of the per-call hot path).

    w1: [S, H], b1: [1, H], w2: [H, A], b2: [1, A] (already transposed to [in, out]).
    Hidden/action dims are lane-padded to 128 so MXU operands and the output are
    lane-dense; padded action columns get a -1e30 bias so they softmax to exactly 0.
    Weights are cast to `matmul_dtype` (default bf16 on all generations); biases stay f32.
    """
    S, H = w1.shape
    A = w2.shape[1]
    Hp = _round_up(H, _LANE)
    Ap = _round_up(A, _LANE)
    neg = jnp.float32(-1e30)

    w1p = jnp.pad(w1, ((0, 0), (0, Hp - H))).astype(matmul_dtype)
    b1p = jnp.pad(b1, ((0, 0), (0, Hp - H))).astype(jnp.float32)
    w2p = jnp.pad(w2, ((0, Hp - H), (0, Ap - A))).astype(matmul_dtype)
    b2p = jnp.pad(b2, ((0, 0), (0, Ap - A)), constant_values=neg).astype(jnp.float32)
    return {"w1": w1p, "b1": b1p, "w2": w2p, "b2": b2p,
            "state_dim": S, "action_dim": A}


def _choose_block_b(B, S, Ap, *, sublane, x_item, out_item, weight_bytes,
                    vmem_budget=24 * 1024 * 1024, max_tb=2048):
    """Pick the batch tile: large enough to amortize per-step overhead, small enough to
    fit VMEM, and guaranteeing >=2 grid steps (v7x megacore) whenever B allows it."""
    per_row = 2 * (x_item * S + out_item * Ap)          # double-buffered x + out tiles
    tb = max(sublane, (vmem_budget - 2 * weight_bytes) // per_row)
    tb = min(tb, max_tb)
    if B >= 2 * sublane:
        # Cap at ceil(B/2) so the "parallel" grid axis has >=2 steps for v7x's 2 TCs.
        tb = min(tb, _round_up(pl.cdiv(B, 2), sublane))
    tb = max(sublane, (tb // sublane) * sublane)
    if tb >= B:
        tb = B                                           # single full-batch block (legal)
    return tb


def policy_net_forward(params, x, *, block_b=None, out_dtype=jnp.float32,
                       return_padded=False):
    """x: [B, S] (f32 or bf16) -> softmax probs [B, A] (or [B, Ap] if return_padded).

    `params` comes from prepare_policy_net_params(); all padding/casting is precomputed.
    If B % block_b != 0 the overhanging rows of the last tile read unspecified data, but
    their stores are dropped so visible results are correct.
    """
    B, S = x.shape
    w1p, b1p, w2p, b2p = params["w1"], params["b1"], params["w2"], params["b2"]
    A = params["action_dim"]
    assert S == params["state_dim"]
    Hp = w1p.shape[1]
    Ap = w2p.shape[1]

    x_item = jnp.dtype(x.dtype).itemsize
    out_item = jnp.dtype(out_dtype).itemsize
    w_item = jnp.dtype(w1p.dtype).itemsize
    weight_bytes = w_item * (S * Hp + Hp * Ap) + 4 * (Hp + Ap)
    sublane = 16 if (w_item < 4 or out_item < 4) else 8   # bf16 packs 2 rows per sublane

    if block_b is None:
        block_b = _choose_block_b(B, S, Ap, sublane=sublane, x_item=x_item,
                                  out_item=out_item, weight_bytes=weight_bytes)
    grid = (pl.cdiv(B, block_b),)

    cost = pl.CostEstimate(
        flops=2 * B * (S * Hp + Hp * Ap),
        transcendentals=B * Ap,                           # exp
        bytes_accessed=x_item * B * S + out_item * B * Ap + weight_bytes,
    )

    out_padded = pl.pallas_call(
        policy_net_kernel,
        out_shape=jax.ShapeDtypeStruct((B, Ap), out_dtype),
        grid=grid,
        in_specs=[
            pl.BlockSpec((block_b, S), lambda i: (i, 0)),   # activation tiles stream
            # Weights/biases: constant index_map -> stay resident in VMEM across steps.
            # (pipeline_mode=pl.Buffered(1) would save their second buffer; skipped as it
            #  is only ~tens of KiB at these shapes.)
            pl.BlockSpec((S, Hp), lambda i: (0, 0)),
            pl.BlockSpec((1, Hp), lambda i: (0, 0)),
            pl.BlockSpec((Hp, Ap), lambda i: (0, 0)),
            pl.BlockSpec((1, Ap), lambda i: (0, 0)),
        ],
        out_specs=pl.BlockSpec((block_b, Ap), lambda i: (i, 0)),
        compiler_params=pltpu.CompilerParams(
            dimension_semantics=("parallel",),              # megacore sharding on v7x
            vmem_limit_bytes=32 * 1024 * 1024,
        ),
        cost_estimate=cost,
    )(x, w1p, b1p, w2p, b2p)

    if return_padded:
        return out_padded          # let a jitted consumer fuse the [:, :A] slice away
    return out_padded[:, :A]


def init_policy_net_params(key, state_dim, hidden_dim, action_dim):
    """Deterministic init mimicking torch.nn.Linear default (U[-1/sqrt(fan_in), +])."""
    k1, k2, k3, k4 = jax.random.split(key, 4)
    bound1 = 1.0 / jnp.sqrt(jnp.float32(state_dim))
    bound2 = 1.0 / jnp.sqrt(jnp.float32(hidden_dim))
    # Stored already transposed: [in, out]
    w1 = jax.random.uniform(k1, (state_dim, hidden_dim), jnp.float32, -bound1, bound1)
    b1 = jax.random.uniform(k2, (1, hidden_dim), jnp.float32, -bound1, bound1)
    w2 = jax.random.uniform(k3, (hidden_dim, action_dim), jnp.float32, -bound2, bound2)
    b2 = jax.random.uniform(k4, (1, action_dim), jnp.float32, -bound2, bound2)
    return w1, b1, w2, b2


def policy_net_ref(x, w1, b1, w2, b2):
    """Pure-JAX f32 reference for validation."""
    h = jnp.maximum(x @ w1 + b1, 0.0)
    logits = h @ w2 + b2
    return jax.nn.softmax(logits, axis=1)


if __name__ == "__main__":
    state_dim, hidden_dim, action_dim = 16, 32, 8
    batch = 64

    key = jax.random.PRNGKey(0)
    kx, kp = jax.random.split(key)
    x = jax.random.normal(kx, (batch, state_dim), dtype=jnp.float32)
    w1, b1, w2, b2 = init_policy_net_params(kp, state_dim, hidden_dim, action_dim)

    # One-time param preparation (padding + bf16 cast) — not on the per-call hot path.
    params = prepare_policy_net_params(w1, b1, w2, b2)

    out = policy_net_forward(params, x)
    out = jax.block_until_ready(out)

    ref = policy_net_ref(x, w1, b1, w2, b2)
    assert out.shape == (batch, action_dim)
    assert out.dtype == jnp.float32
    max_err = float(jnp.max(jnp.abs(out - ref)))
    # Tolerance accounts for bf16 matmul inputs (f32 accumulation, f32 softmax).
    assert jnp.allclose(out, ref, atol=5e-3, rtol=5e-3), max_err
    # Exact normalization: rows of the softmax sum to 1 (up to f32 rounding).
    row_sums = jnp.sum(out.astype(jnp.float32), axis=1)
    assert jnp.allclose(row_sums, jnp.ones((batch,)), atol=1e-4), \
        float(jnp.max(jnp.abs(row_sums - 1.0)))

    print("KERNEL_OK")
</pallas_src>

<mosaic_0001>
module attributes {stable_mosaic.version = 11 : i64} {
  func.func @policy_net_kernel(%arg0: i32, %arg1: memref<32x16xf32, #tpu.memory_space<vmem>>, %arg2: memref<16x128xbf16, #tpu.memory_space<vmem>>, %arg3: memref<1x128xf32, #tpu.memory_space<vmem>>, %arg4: memref<128x128xbf16, #tpu.memory_space<vmem>>, %arg5: memref<1x128xf32, #tpu.memory_space<vmem>>, %arg6: memref<32x128xf32, #tpu.memory_space<vmem>>) attributes {dimension_semantics = [#tpu.dimension_semantics<parallel>], iteration_bounds = array<i64: 2>, scalar_prefetch = 0 : i64, scratch_operands = 0 : i64, tpu.core_type = #tpu.core_type<tc>, window_params = [{transform_indices = @transform_0, window_bounds = array<i64: 32, 16>}, {pipeline_mode = #tpu.pipeline_mode<synchronous>, transform_indices = @transform_1, window_bounds = array<i64: 16, 128>}, {pipeline_mode = #tpu.pipeline_mode<synchronous>, transform_indices = @transform_2, window_bounds = array<i64: 1, 128>}, {pipeline_mode = #tpu.pipeline_mode<synchronous>, transform_indices = @transform_3, window_bounds = array<i64: 128, 128>}, {pipeline_mode = #tpu.pipeline_mode<synchronous>, transform_indices = @transform_4, window_bounds = array<i64: 1, 128>}, {transform_indices = @transform_5, window_bounds = array<i64: 32, 128>}]} {
    %c0 = arith.constant 0 : index
    %c0_0 = arith.constant 0 : index
    %0 = vector.load %arg1[%c0, %c0_0] : memref<32x16xf32, #tpu.memory_space<vmem>>, vector<32x16xf32>
    %1 = arith.truncf %0 : vector<32x16xf32> to vector<32x16xbf16>
    %c0_1 = arith.constant 0 : index
    %c0_2 = arith.constant 0 : index
    %2 = vector.load %arg2[%c0_1, %c0_2] : memref<16x128xbf16, #tpu.memory_space<vmem>>, vector<16x128xbf16>
    %cst = arith.constant dense<0.000000e+00> : vector<32x128xf32>
    %3 = tpu.matmul %1, %2, %cst {dimension_numbers = #tpu.dot_dimension_numbers<[1], [0], [0], [1], [0, 0, 1, 1], [], []>} : vector<32x16xbf16>, vector<16x128xbf16>, vector<32x128xf32> -> vector<32x128xf32>
    %c0_3 = arith.constant 0 : index
    %c0_4 = arith.constant 0 : index
    %4 = vector.load %arg3[%c0_3, %c0_4] : memref<1x128xf32, #tpu.memory_space<vmem>>, vector<1x128xf32>
    %5 = vector.broadcast %4 : vector<1x128xf32> to vector<32x128xf32>
    %6 = arith.addf %3, %5 : vector<32x128xf32>
    %cst_5 = arith.constant 0.000000e+00 : f32
    %7 = vector.broadcast %cst_5 : f32 to vector<32x128xf32>
    %8 = arith.maximumf %6, %7 : vector<32x128xf32>
    %9 = arith.truncf %8 : vector<32x128xf32> to vector<32x128xbf16>
    %c0_6 = arith.constant 0 : index
    %c0_7 = arith.constant 0 : index
    %10 = vector.load %arg4[%c0_6, %c0_7] : memref<128x128xbf16, #tpu.memory_space<vmem>>, vector<128x128xbf16>
    %cst_8 = arith.constant dense<0.000000e+00> : vector<32x128xf32>
    %11 = tpu.matmul %9, %10, %cst_8 {dimension_numbers = #tpu.dot_dimension_numbers<[1], [0], [0], [1], [0, 0, 1, 1], [], []>} : vector<32x128xbf16>, vector<128x128xbf16>, vector<32x128xf32> -> vector<32x128xf32>
    %c0_9 = arith.constant 0 : index
    %c0_10 = arith.constant 0 : index
    %12 = vector.load %arg5[%c0_9, %c0_10] : memref<1x128xf32, #tpu.memory_space<vmem>>, vector<1x128xf32>
    %13 = vector.broadcast %12 : vector<1x128xf32> to vector<32x128xf32>
    %14 = arith.addf %11, %13 : vector<32x128xf32>
    %cst_11 = arith.constant dense<0xFF800000> : vector<32xf32>
    %15 = vector.multi_reduction <maximumf>, %14, %cst_11 [1] : vector<32x128xf32> to vector<32xf32>
    %16 = vector.shape_cast %15 : vector<32xf32> to vector<32x1xf32>
    %17 = vector.broadcast %16 : vector<32x1xf32> to vector<32x128xf32>
    %18 = arith.subf %14, %17 : vector<32x128xf32>
    %19 = math.exp %18 : vector<32x128xf32>
    %cst_12 = arith.constant dense<0.000000e+00> : vector<32xf32>
    %20 = vector.multi_reduction <add>, %19, %cst_12 [1] : vector<32x128xf32> to vector<32xf32>
    %21 = vector.shape_cast %20 : vector<32xf32> to vector<32x1xf32>
    %22 = vector.broadcast %21 : vector<32x1xf32> to vector<32x128xf32>
    %23 = arith.divf %19, %22 : vector<32x128xf32>
    %c0_13 = arith.constant 0 : index
    %c0_14 = arith.constant 0 : index
    %24 = vector.load %arg6[%c0_13, %c0_14] : memref<32x128xf32, #tpu.memory_space<vmem>>, vector<32x128xf32>
    tpu.vector_store %arg6[%c0_13, %c0_14], %23 {strides = array<i32>} : memref<32x128xf32, #tpu.memory_space<vmem>>, vector<32x128xf32>,
    return
  }
  func.func @transform_0(%arg0: i32) -> (i32, i32) {
    %c0_i32 = arith.constant 0 : i32
    %c0_i32_0 = arith.constant 0 : i32
    return %arg0, %c0_i32 : i32, i32
  }
  func.func @transform_1(%arg0: i32) -> (i32, i32) {
    %c0_i32 = arith.constant 0 : i32
    %c0_i32_0 = arith.constant 0 : i32
    %c0_i32_1 = arith.constant 0 : i32
    return %c0_i32, %c0_i32_0 : i32, i32
  }
  func.func @transform_2(%arg0: i32) -> (i32, i32) {
    %c0_i32 = arith.constant 0 : i32
    %c0_i32_0 = arith.constant 0 : i32
    %c0_i32_1 = arith.constant 0 : i32
    return %c0_i32, %c0_i32_0 : i32, i32
  }
  func.func @transform_3(%arg0: i32) -> (i32, i32) {
    %c0_i32 = arith.constant 0 : i32
    %c0_i32_0 = arith.constant 0 : i32
    %c0_i32_1 = arith.constant 0 : i32
    return %c0_i32, %c0_i32_0 : i32, i32
  }
  func.func @transform_4(%arg0: i32) -> (i32, i32) {
    %c0_i32 = arith.constant 0 : i32
    %c0_i32_0 = arith.constant 0 : i32
    %c0_i32_1 = arith.constant 0 : i32
    return %c0_i32, %c0_i32_0 : i32, i32
  }
  func.func @transform_5(%arg0: i32) -> (i32, i32) {
    %c0_i32 = arith.constant 0 : i32
    %c0_i32_0 = arith.constant 0 : i32
    return %arg0, %c0_i32 : i32, i32
  }
}

</mosaic_0001>

<llo_original>
// kernel: tpu_custom_call.1
$region0: #{tpu_custom_call.1}
  #allocation0 [shape = 'u32[]', space=smem, size = 0x4, offset = 0x4, fixed_abs, tag = 'smem constant byte address 0x4 - core index']
  #allocation1 [shape = 'u32[72,128]{1,0:T(1,128)}', space=vmem, size = 0x9000, scoped, tag = 'internal scratch']
  %s0 = inlined_call_operand.vmem [shape: f32[64,16], index: 0, kind: input, shape index: {}]
  %s1 = inlined_call_operand.vmem [shape: bf16[16,128], index: 1, kind: input, shape index: {}]
  %s2 = inlined_call_operand.vmem [shape: f32[1,128], index: 2, kind: input, shape index: {}]
  %s3 = inlined_call_operand.vmem [shape: bf16[128,128], index: 3, kind: input, shape index: {}]
  %s4 = inlined_call_operand.vmem [shape: f32[1,128], index: 4, kind: input, shape index: {}]
  %s5 = inlined_call_operand.hbm [shape: f32[64,128], index: 5, kind: output, shape index: {}]
  %s6 = sld [smem:[#allocation0]]
  $region53: #{tpu_custom_call.1} parent=0
    _
  %s8 = ssub.s32 1, %s6
  %s9 = scalar_select 0, %s8, %s6
  $region1: #{tpu_custom_call.1} parent=0
    #allocation2 [shape = 'u8[32768]{0}', space=vmem, size = 0x8000, scoped, tag = 'output window, operand 0']
    #allocation3 [shape = 's32[2]{0}', space=sflag, size = 0x8, scoped, tag = 'scoped memory for tpu_custom_call.1']
    %10 = vsyncpa [#allocation3], 0
    %s11 = scalar_lea.sflag [#allocation3], 1
    %12 = vsyncpa %s11, 0
    loop: start=0, step=1, limit=4
    $region2: #{tpu_custom_call.1} parent=1 // loop_pre_header
      _
    $region3: #{tpu_custom_call.1} parent=1 // loop_header
      %s14 = sphi 0, %s18
      %p15 = scmp.ge.s32.totalorder %s14, 4
      %s24 = sphi 0, %s26
      %s27 = sphi 0, %s24
      %s28 = sphi 0, %s27
      %s44 = sphi 0, %s28
      %s48 = sphi 0, %s48
      %s50 = sphi 0, %s48
      %s51 = sphi 0, %s50
      %s65 = sphi 0, %s51
      %s69 = sphi 0, %s69
      %s71 = sphi 0, %s69
      %s72 = sphi 0, %s71
      %s86 = sphi 0, %s72
      %s90 = sphi 0, %s90
      %s92 = sphi 0, %s90
      %s93 = sphi 0, %s92
      %s107 = sphi 0, %s93
      %s111 = sphi 0, %s111
      %s113 = sphi 0, %s111
      %s114 = sphi 0, %s113
      %s128 = sphi 0, %s114
      %s134 = sphi 0, %s136
      %s137 = sphi 0, %s134
      %s138 = sphi 0, %s137
      %s154 = sphi 0, %s138
    $region4: #{tpu_custom_call.1} parent=1 // loop_header_branch
      %17 = sbr.rel (%p15) target = $region8
    $region5: #{tpu_custom_call.1} parent=1 // loop_body
      %s19 = ssub.s32 %s14, 1
      %s20 = ssub.s32 %s14, 2
      %s21 = sadd.s32 %s14, 1
      %s22 = ssub.s32 %s14, %s21
      %p23 = scmp.eq.s32.totalorder %s22, 0
      %s25 = sadd.s32 %s24, 1
      %s26 = scalar_select %p23, %s24, %s25
      %p29 = pneg %p23
      %p30 = scmp.eq.s32.totalorder %s14, 1
      %p31 = por %p29, %p30
      %p32 = scmp.ne.s32.totalorder %s24, %s27
      %p33 = scmp.eq.s32.totalorder %s14, 0
      %p34 = por %p32, %p33
      %p35 = scmp.ne.s32.totalorder %s24, %s27
      %p36 = scmp.eq.s32.totalorder %s19, 1
      %p37 = por %p35, %p36
      %p38 = scmp.ne.s32.totalorder %s27, %s28
      %p39 = scmp.eq.s32.totalorder %s19, 0
      %p40 = por %p38, %p39
      %p41 = scmp.ne.s32.totalorder %s27, %s28
      %p42 = scmp.eq.s32.totalorder %s20, 1
      %p43 = por %p41, %p42
      %p45 = scmp.ne.s32.totalorder %s28, %s44
      %p46 = scmp.eq.s32.totalorder %s20, 0
      %p47 = por %p45, %p46
      %s49 = sadd.s32 %s48, 1
      %p52 = scmp.eq.s32.totalorder %s14, 1
      %p53 = scmp.ne.s32.totalorder %s48, %s50
      %p54 = scmp.eq.s32.totalorder %s14, 0
      %p55 = por %p53, %p54
      %p56 = scmp.ne.s32.totalorder %s48, %s50
      %p57 = scmp.eq.s32.totalorder %s19, 1
      %p58 = por %p56, %p57
      %p59 = scmp.ne.s32.totalorder %s50, %s51
      %p60 = scmp.eq.s32.totalorder %s19, 0
      %p61 = por %p59, %p60
      %p62 = scmp.ne.s32.totalorder %s50, %s51
      %p63 = scmp.eq.s32.totalorder %s20, 1
      %p64 = por %p62, %p63
      %p66 = scmp.ne.s32.totalorder %s51, %s65
      %p67 = scmp.eq.s32.totalorder %s20, 0
      %p68 = por %p66, %p67
      %s70 = sadd.s32 %s69, 1
      %p73 = scmp.eq.s32.totalorder %s14, 1
      %p74 = scmp.ne.s32.totalorder %s69, %s71
      %p75 = scmp.eq.s32.totalorder %s14, 0
      %p76 = por %p74, %p75
      %p77 = scmp.ne.s32.totalorder %s69, %s71
      %p78 = scmp.eq.s32.totalorder %s19, 1
      %p79 = por %p77, %p78
      %p80 = scmp.ne.s32.totalorder %s71, %s72
      %p81 = scmp.eq.s32.totalorder %s19, 0
      %p82 = por %p80, %p81
      %p83 = scmp.ne.s32.totalorder %s71, %s72
      %p84 = scmp.eq.s32.totalorder %s20, 1
      %p85 = por %p83, %p84
      %p87 = scmp.ne.s32.totalorder %s72, %s86
      %p88 = scmp.eq.s32.totalorder %s20, 0
      %p89 = por %p87, %p88
      %s91 = sadd.s32 %s90, 1
      %p94 = scmp.eq.s32.totalorder %s14, 1
      %p95 = scmp.ne.s32.totalorder %s90, %s92
      %p96 = scmp.eq.s32.totalorder %s14, 0
      %p97 = por %p95, %p96
      %p98 = scmp.ne.s32.totalorder %s90, %s92
      %p99 = scmp.eq.s32.totalorder %s19, 1
      %p100 = por %p98, %p99
      %p101 = scmp.ne.s32.totalorder %s92, %s93
      %p102 = scmp.eq.s32.totalorder %s19, 0
      %p103 = por %p101, %p102
      %p104 = scmp.ne.s32.totalorder %s92, %s93
      %p105 = scmp.eq.s32.totalorder %s20, 1
      %p106 = por %p104, %p105
      %p108 = scmp.ne.s32.totalorder %s93, %s107
      %p109 = scmp.eq.s32.totalorder %s20, 0
      %p110 = por %p108, %p109
      %s112 = sadd.s32 %s111, 1
      %p115 = scmp.eq.s32.totalorder %s14, 1
      %p116 = scmp.ne.s32.totalorder %s111, %s113
      %p117 = scmp.eq.s32.totalorder %s14, 0
      %p118 = por %p116, %p117
      %p119 = scmp.ne.s32.totalorder %s111, %s113
      %p120 = scmp.eq.s32.totalorder %s19, 1
      %p121 = por %p119, %p120
      %p122 = scmp.ne.s32.totalorder %s113, %s114
      %p123 = scmp.eq.s32.totalorder %s19, 0
      %p124 = por %p122, %p123
      %p125 = scmp.ne.s32.totalorder %s113, %s114
      %p126 = scmp.eq.s32.totalorder %s20, 1
      %p127 = por %p125, %p126
      %p129 = scmp.ne.s32.totalorder %s114, %s128
      %p130 = scmp.eq.s32.totalorder %s20, 0
      %p131 = por %p129, %p130
      %s132 = ssub.s32 %s14, %s21
      %p133 = scmp.eq.s32.totalorder %s132, 0
      %s135 = sadd.s32 %s134, 1
      %s136 = scalar_select %p133, %s134, %s135
      %p139 = pneg %p133
      %p140 = scmp.eq.s32.totalorder %s14, 1
      %p141 = por %p139, %p140
      %p142 = scmp.ne.s32.totalorder %s134, %s137
      %p143 = scmp.eq.s32.totalorder %s14, 0
      %p144 = por %p142, %p143
      %p145 = scmp.ne.s32.totalorder %s134, %s137
      %p146 = scmp.eq.s32.totalorder %s19, 1
      %p147 = por %p145, %p146
      %p148 = scmp.ne.s32.totalorder %s137, %s138
      %p149 = scmp.eq.s32.totalorder %s19, 0
      %p150 = por %p148, %p149
      %p151 = scmp.ne.s32.totalorder %s137, %s138
      %p152 = scmp.eq.s32.totalorder %s20, 1
      %p153 = por %p151, %p152
      %p155 = scmp.ne.s32.totalorder %s138, %s154
      %p156 = scmp.eq.s32.totalorder %s20, 0
      %p157 = por %p155, %p156
      %p158 = scmp.le.s32.totalorder 1, %s14
      %p159 = scmp.lt.s32.totalorder %s14, 3
      %p160 = pnand %p158, %p159
      %p161 = pneg %p160
      // Predicated region
      $region9: #{tpu_custom_call.1} parent=5 // pred_check
        _
      $region10: #{tpu_custom_call.1} parent=5 // pred_check_branch
        %163 = sbr.rel (%p160) target = $region12
      $region11: #{tpu_custom_call.1} parent=5 // pred_region
        %s164 = ssub.s32 %s14, 1
        // Predicated region
        $region13: #{tpu_custom_call.1} parent=11 // pred_check
          %p165 = pneg %p61
        $region14: #{tpu_custom_call.1} parent=11 // pred_check_branch
          %167 = sbr.rel (%p165) target = $region16
        $region15: #{tpu_custom_call.1} parent=11 // pred_region
          _
        $region16: #{tpu_custom_call.1} parent=11 // pred_fallthru
          _
        // Predicated region
        $region17: #{tpu_custom_call.1} parent=11 // pred_check
          %p168 = pneg %p82
        $region18: #{tpu_custom_call.1} parent=11 // pred_check_branch
          %170 = sbr.rel (%p168) target = $region20
        $region19: #{tpu_custom_call.1} parent=11 // pred_region
          _
        $region20: #{tpu_custom_call.1} parent=11 // pred_fallthru
          _
        // Predicated region
        $region21: #{tpu_custom_call.1} parent=11 // pred_check
          %p171 = pneg %p103
        $region22: #{tpu_custom_call.1} parent=11 // pred_check_branch
          %173 = sbr.rel (%p171) target = $region24
        $region23: #{tpu_custom_call.1} parent=11 // pred_region
          _
        $region24: #{tpu_custom_call.1} parent=11 // pred_fallthru
          _
        // Predicated region
        $region25: #{tpu_custom_call.1} parent=11 // pred_check
          %p174 = pneg %p124
        $region26: #{tpu_custom_call.1} parent=11 // pred_check_branch
          %176 = sbr.rel (%p174) target = $region28
        $region27: #{tpu_custom_call.1} parent=11 // pred_region
          _
        $region28: #{tpu_custom_call.1} parent=11 // pred_fallthru
          _
      $region12: #{tpu_custom_call.1} parent=5 // pred_fallthru
        _
      %p177 = scmp.lt.s32.totalorder %s14, 2
      // Predicated region
      $region29: #{tpu_custom_call.1} parent=5 // pred_check
        %p178 = pneg %p177
      $region30: #{tpu_custom_call.1} parent=5 // pred_check_branch
        %180 = sbr.rel (%p178) target = $region32
      $region31: #{tpu_custom_call.1} parent=5 // pred_region
        // Predicated region
        $region33: #{tpu_custom_call.1} parent=31 // pred_check
          %p181 = pneg %p34
        $region34: #{tpu_custom_call.1} parent=31 // pred_check_branch
          %183 = sbr.rel (%p181) target = $region36
        $region35: #{tpu_custom_call.1} parent=31 // pred_region
          %s184 = smul.u32 4, %s14
          %p185 = scmp.lt.s32.totalorder %s184, 7
          %s186 = scalar_select %p185, %s184, 7
          %s187 = smul.addr %s186, 8
          %s188 = scalar_lea.vmem %s0, %s187
          %s189 = smul.u32 4, %s14
        $region36: #{tpu_custom_call.1} parent=31 // pred_fallthru
          _
      $region32: #{tpu_custom_call.1} parent=5 // pred_fallthru
        _
      %p190 = scmp.le.s32.totalorder 1, %s14
      %p191 = scmp.lt.s32.totalorder %s14, 3
      %p192 = pnand %p190, %p191
      %p193 = pneg %p192
      // Predicated region
      $region37: #{tpu_custom_call.1} parent=5 // pred_check
        _
      $region38: #{tpu_custom_call.1} parent=5 // pred_check_branch
        %195 = sbr.rel (%p192) target = $region40
      $region39: #{tpu_custom_call.1} parent=5 // pred_region
        %s196 = ssub.s32 %s14, 1
        %s197 = smul.u32 4, %s19
        %p198 = scmp.lt.s32.totalorder %s197, 7
        %s199 = scalar_select %p198, %s197, 7
        %s200 = smul.addr %s199, 8
        %s201 = scalar_lea.vmem %s0, %s200
        %p202 = pneg %p40
        %p203 = pneg %p37
        %p204 = pneg %p61
        %p205 = pneg %p58
        %p206 = pneg %p82
        %p207 = pneg %p79
        %p208 = pneg %p103
        %p209 = pneg %p100
        %p210 = pneg %p124
        %p211 = pneg %p121
        %p212 = pneg %p150
        %p213 = pneg %p147
        %s214 = sand.u32 %s137, 1
        %s215 = scalar_lea.sflag [#allocation3], %s214
        %s216 = sand.u32 %s137, 1
        %s217 = smul.addr %s216, 32
        %s218 = scalar_lea.vmem [#allocation2], %s217
        %s219 = smul.u32 4, %s19
        %p220 = scmp.lt.s32.totalorder %s219, 7
        %s221 = scalar_select %p220, %s219, 7
        %s222 = smul.addr %s221, 8
        %s223 = scalar_lea.vmem %s0, %s222
        %s224 = smul.u32 4, %s19
        %s225 = smul.u32 4, %s19
        %v227 = vld [vmem:[%s223] sm:$0xff]
        %v228 = vld [vmem:[%s223 + $0x8] sm:$0xff]
        %v229 = vld [vmem:[%s223 + $0x10] sm:$0xff]
        %v230 = vld [vmem:[%s223 + $0x18] sm:$0xff]
        %v231 = vpack.c.bf16 %v228, %v227
        %v232 = vpack.c.bf16 %v230, %v229
        %v233 = vld [vmem:[%s1] sm:$0xf]
        %v234 = vld [vmem:[%s1 + $0x4] sm:$0xf]
        %v235 = vld [vmem:[%s2] sm:$0x1]
        %v237 = vperm.slane %v235, 0
        %v241 = vunpack.c.l.b16 %v233
        %v242 = vunpack.c.l.b16 %v234
        %v243 = vpack.c.b16 %v242, %v241
        %vm245 = vcmask 130048
        %v247 = vsel %vm245, %v231, 0
        %v250 = vsel %vm245, %v232, 0
        %252 = vmatpush.bf16.msra.mxu0 0
        %253 = vmatpush.bf16.msra.mxu0 0
        %254 = vmatpush.bf16.msra.mxu0 0
        %255 = vmatpush.bf16.msra.mxu0 0
        %256 = vmatpush.bf16.msra.mxu0 0
        %257 = vmatpush.bf16.msra.mxu0 0
        %258 = vmatpush.bf16.msra.mxu0 0
        %259 = vmatpush.bf16.msra.mxu0 %v243
        %260 = vmatmul.bf16.gmra.mxu0 %v247
        %v261 = vpop.f32.mrf.mxu0
        %v262 = vadd.f32 %v237, %v261
        %v263 = vpop.f32.mrf.mxu0
        %v264 = vadd.f32 %v237, %v263
        %265 = vmatmul.bf16.gmra.mxu0 %v250
        %v266 = vpop.f32.mrf.mxu0
        %v267 = vadd.f32 %v237, %v266
        %v268 = vpop.f32.mrf.mxu0
        %v269 = vadd.f32 %v237, %v268
        %270 = vdwg.mxu0
        %v271 = vmax.f32 %v262, 0.0
        %v272 = vmax.f32 %v264, 0.0
        %v273 = vmax.f32 %v267, 0.0
        %v274 = vmax.f32 %v269, 0.0
        %v275 = vpack.c.bf16 %v272, %v271
        %v276 = vpack.c.bf16 %v274, %v273
        %v277 = vld [vmem:[%s3] sm:$0xf]
        %v278 = vld [vmem:[%s3 + $0x4] sm:$0xf]
        %v279 = vld [vmem:[%s3 + $0x8] sm:$0xf]
        %v280 = vld [vmem:[%s3 + $0xc] sm:$0xf]
        %v281 = vld [vmem:[%s3 + $0x10] sm:$0xf]
        %v282 = vld [vmem:[%s3 + $0x14] sm:$0xf]
        %v283 = vld [vmem:[%s3 + $0x18] sm:$0xf]
        %v284 = vld [vmem:[%s3 + $0x1c] sm:$0xf]
        %v285 = vld [vmem:[%s3 + $0x20] sm:$0xf]
        %v286 = vld [vmem:[%s3 + $0x24] sm:$0xf]
        %v287 = vld [vmem:[%s3 + $0x28] sm:$0xf]
        %v288 = vld [vmem:[%s3 + $0x2c] sm:$0xf]
        %v289 = vld [vmem:[%s3 + $0x30] sm:$0xf]
        %v290 = vld [vmem:[%s3 + $0x34] sm:$0xf]
        %v291 = vld [vmem:[%s3 + $0x38] sm:$0xf]
        %v292 = vld [vmem:[%s3 + $0x3c] sm:$0xf]
        %v293 = vld [vmem:[%s4] sm:$0x1]
        %v295 = vperm.slane %v293, 0
        %v313 = vunpack.c.l.b16 %v277
        %v314 = vunpack.c.l.b16 %v278
        %v315 = vunpack.c.l.b16 %v279
        %v316 = vunpack.c.l.b16 %v280
        %v317 = vunpack.c.l.b16 %v281
        %v318 = vunpack.c.l.b16 %v282
        %v319 = vunpack.c.l.b16 %v283
        %v320 = vunpack.c.l.b16 %v284
        %v321 = vunpack.c.l.b16 %v285
        %v322 = vunpack.c.l.b16 %v286
        %v323 = vunpack.c.l.b16 %v287
        %v324 = vunpack.c.l.b16 %v288
        %v325 = vunpack.c.l.b16 %v289
        %v326 = vunpack.c.l.b16 %v290
        %v327 = vunpack.c.l.b16 %v291
        %v328 = vunpack.c.l.b16 %v292
        %v329 = vpack.c.b16 %v314, %v313
        %v330 = vpack.c.b16 %v316, %v315
        %v331 = vpack.c.b16 %v318, %v317
        %v332 = vpack.c.b16 %v320, %v319
        %v333 = vpack.c.b16 %v322, %v321
        %v334 = vpack.c.b16 %v324, %v323
        %v335 = vpack.c.b16 %v326, %v325
        %v336 = vpack.c.b16 %v328, %v327
        %345 = vmatpush.bf16.msra.mxu0 %v336
        %346 = vmatpush.bf16.msra.mxu0 %v335
        %347 = vmatpush.bf16.msra.mxu0 %v334
        %348 = vmatpush.bf16.msra.mxu0 %v333
        %349 = vmatpush.bf16.msra.mxu0 %v332
        %350 = vmatpush.bf16.msra.mxu0 %v331
        %351 = vmatpush.bf16.msra.mxu0 %v330
        %352 = vmatpush.bf16.msra.mxu0 %v329
        %353 = vmatmul.bf16.gmra.mxu0 %v275
        %v354 = vpop.f32.mrf.mxu0
        %v355 = vadd.f32 %v295, %v354
        %v356 = vpop.f32.mrf.mxu0
        %v357 = vadd.f32 %v295, %v356
        %358 = vmatmul.bf16.gmra.mxu0 %v276
        %v359 = vpop.f32.mrf.mxu0
        %v360 = vadd.f32 %v295, %v359
        %v361 = vpop.f32.mrf.mxu0
        %v362 = vadd.f32 %v295, %v361
        %363 = vdwg.mxu0
        %364 = vmax.xlane.f32.xlu0 %v355
        %v365 = vpop.xlane.xlu0 %364
        %366 = vmax.xlane.f32.xlu0 %v357
        %v367 = vpop.xlane.xlu0 %366
        %368 = vmax.xlane.f32.xlu0 %v360
        %v369 = vpop.xlane.xlu0 %368
        %370 = vmax.xlane.f32.xlu0 %v362
        %v371 = vpop.xlane.xlu0 %370
        %v372 = vsub.f32 %v355, %v365
        %v373 = vsub.f32 %v357, %v367
        %v374 = vsub.f32 %v360, %v369
        %v375 = vsub.f32 %v362, %v371
        %v376 = vmul.f32 %v372, 1.442695
        %v377 = vpow.pop %v376
        %v378 = vmul.f32 %v373, 1.442695
        %v379 = vpow.pop %v378
        %v380 = vmul.f32 %v374, 1.442695
        %v381 = vpow.pop %v380
        %v382 = vmul.f32 %v375, 1.442695
        %v383 = vpow.pop %v382
        %384 = vadd.xlane.f32.xlu0 %v377
        %v385 = vpop.xlane.xlu0 %384
        %386 = vadd.xlane.f32.xlu0 %v379
        %v387 = vpop.xlane.xlu0 %386
        %388 = vadd.xlane.f32.xlu0 %v381
        %v389 = vpop.xlane.xlu0 %388
        %390 = vadd.xlane.f32.xlu0 %v383
        %v391 = vpop.xlane.xlu0 %390
        %v392 = vrcp.pop %v385
        %v393 = vmul.f32 %v385, %v392
        %v394 = vsub.f32 1.0, %v393
        %v395 = vmul.f32 %v392, %v394
        %v396 = vadd.f32 %v392, %v395
        %vm397 = vweird.f32 %v385
        %vm398 = vweird.f32 %v392
        %vm399 = vmor %vm397, %vm398
        %v400 = vsel %vm399, %v392, %v396
        %v401 = vand.u32 2147483647, %v385
        %vm402 = vcmp.eq.f32.partialorder %v401, 8.507059e+37
        %v403 = vand.u32 %v385, 2147483648
        %v404 = vor.u32 1.1754944e-38, %v403
        %v405 = vsel %vm402, %v404, %v400
        %v406 = vmul.f32 %v377, %v405
        %v407 = vrcp.pop %v387
        %v408 = vmul.f32 %v387, %v407
        %v409 = vsub.f32 1.0, %v408
        %v410 = vmul.f32 %v407, %v409
        %v411 = vadd.f32 %v407, %v410
        %vm412 = vweird.f32 %v387
        %vm413 = vweird.f32 %v407
        %vm414 = vmor %vm412, %vm413
        %v415 = vsel %vm414, %v407, %v411
        %v416 = vand.u32 2147483647, %v387
        %vm417 = vcmp.eq.f32.partialorder %v416, 8.507059e+37
        %v418 = vand.u32 %v387, 2147483648
        %v419 = vor.u32 1.1754944e-38, %v418
        %v420 = vsel %vm417, %v419, %v415
        %v421 = vmul.f32 %v379, %v420
        %v422 = vrcp.pop %v389
        %v423 = vmul.f32 %v389, %v422
        %v424 = vsub.f32 1.0, %v423
        %v425 = vmul.f32 %v422, %v424
        %v426 = vadd.f32 %v422, %v425
        %vm427 = vweird.f32 %v389
        %vm428 = vweird.f32 %v422
        %vm429 = vmor %vm427, %vm428
        %v430 = vsel %vm429, %v422, %v426
        %v431 = vand.u32 2147483647, %v389
        %vm432 = vcmp.eq.f32.partialorder %v431, 8.507059e+37
        %v433 = vand.u32 %v389, 2147483648
        %v434 = vor.u32 1.1754944e-38, %v433
        %v435 = vsel %vm432, %v434, %v430
        %v436 = vmul.f32 %v381, %v435
        %v437 = vrcp.pop %v391
        %v438 = vmul.f32 %v391, %v437
        %v439 = vsub.f32 1.0, %v438
        %v440 = vmul.f32 %v437, %v439
        %v441 = vadd.f32 %v437, %v440
        %vm442 = vweird.f32 %v391
        %vm443 = vweird.f32 %v437
        %vm444 = vmor %vm442, %vm443
        %v445 = vsel %vm444, %v437, %v441
        %v446 = vand.u32 2147483647, %v391
        %vm447 = vcmp.eq.f32.partialorder %v446, 8.507059e+37
        %v448 = vand.u32 %v391, 2147483648
        %v449 = vor.u32 1.1754944e-38, %v448
        %v450 = vsel %vm447, %v449, %v445
        %v451 = vmul.f32 %v383, %v450
        %452 = vst [vmem:[%s218] sm:$0xff] %v406
        %453 = vst [vmem:[%s218 + $0x8] sm:$0xff] %v421
        %454 = vst [vmem:[%s218 + $0x10] sm:$0xff] %v436
        %455 = vst [vmem:[%s218 + $0x18] sm:$0xff] %v451
        %s456 = sand.u32 %s137, 1
        %s457 = scalar_lea.sflag [#allocation3], %s456
        %s458 = sand.u32 %s137, 1
        %s459 = smul.addr %s458, 32
        %s460 = scalar_lea.vmem [#allocation2], %s459
        // Predicated region
        $region41: #{tpu_custom_call.1} parent=39 // pred_check
          %p461 = pneg %p147
        $region42: #{tpu_custom_call.1} parent=39 // pred_check_branch
          %463 = sbr.rel (%p461) target = $region44
        $region43: #{tpu_custom_call.1} parent=39 // pred_region
          %s464 = smul.u32 4, %s19
          %466 = vsyncadd %s457, 0
          %s467 = smul.addr %s464, 8
          %s468 = scalar_lea.hbm %s5, %s467
          %s469 = sshll.u32 %s460, 4
          %s470 = int_to_ptr.vmem [resolvable:$true] %s469
          %s471 = sshll.u32 %s468, 4
          %s472 = int_to_ptr.hbm [resolvable:$true] %s471
          %477 = dma.vmem_to_hbm [thread:$0]  %s470, 512, %s472, %s457, 128, 128, 8
        $region44: #{tpu_custom_call.1} parent=39 // pred_fallthru
          _
      $region40: #{tpu_custom_call.1} parent=5 // pred_fallthru
        _
      %p478 = scmp.le.s32.totalorder 2, %s14
      // Predicated region
      $region45: #{tpu_custom_call.1} parent=5 // pred_check
        %p479 = pneg %p478
      $region46: #{tpu_custom_call.1} parent=5 // pred_check_branch
        %481 = sbr.rel (%p479) target = $region48
      $region47: #{tpu_custom_call.1} parent=5 // pred_region
        %s482 = ssub.s32 %s14, 2
        // Predicated region
        $region49: #{tpu_custom_call.1} parent=47 // pred_check
          %p483 = pneg %p153
        $region50: #{tpu_custom_call.1} parent=47 // pred_check_branch
          %485 = sbr.rel (%p483) target = $region52
        $region51: #{tpu_custom_call.1} parent=47 // pred_region
          %s486 = sand.u32 %s138, 1
          %s487 = scalar_lea.sflag [#allocation3], %s486
          %s488 = sand.u32 %s138, 1
          %s489 = smul.addr %s488, 32
          %s490 = scalar_lea.vmem [#allocation2], %s489
          %492 = dma.done %s487, 512
        $region52: #{tpu_custom_call.1} parent=47 // pred_fallthru
          _
      $region48: #{tpu_custom_call.1} parent=5 // pred_fallthru
        _
    $region6: #{tpu_custom_call.1} parent=1 // loop_footer
      %s18 = sadd.s32 1, %s14
    $region7: #{tpu_custom_call.1} parent=1 // loop_footer_branch
      %13 = sbr.rel target = $region3
    $region8: #{tpu_custom_call.1} parent=1 // loop_exit
      _
    %493 = vsyncpa [#allocation3], 1
    %s494 = scalar_lea.sflag [#allocation3], 1
    %495 = vsyncpa %s494, 1

</llo_original>
